<compile_context>
chip_gen: v6e
topology: v6e:2x2x1
jax: 0.10.0
libtpu: 0.0.40
codegen_flags: <defaults>
</compile_context>

<pallas_src>
import numpy as np
import jax
import jax.numpy as jnp
from jax import lax
from jax.experimental import pallas as pl
from jax.experimental.pallas import tpu as pltpu


# ----------------------------- plain-JAX glue -------------------------------

def _round_up(x, m):
    return ((x + m - 1) // m) * m


def get_weight_model(i_max, j_max, sigma):
    """Mirror of WeightedPartialConv2d.get_weight_model (returns (1,1,H,W))."""
    i = jnp.linspace(0.0, i_max - 1, i_max) - i_max // 2
    j = jnp.linspace(0.0, j_max - 1, j_max) - j_max // 2
    mi, mj = jnp.meshgrid(i, j, indexing="ij")
    q = jnp.sqrt(mi ** 2 + mj ** 2)
    q1 = np.sqrt(10.0) / np.pi * sigma
    safe_q = jnp.maximum(q, 1e-30)  # avoid 0-division in un-selected branch
    kernel = jnp.where(
        q <= q1,
        jnp.exp(-((np.pi * q / sigma) ** 2) / 5.0),
        (q1 / safe_q) ** 4 / (np.e ** 2),
    )
    kernel = jnp.maximum(kernel, 1e-8)
    return kernel[None, None]


def _im2col_km(x, kh, kw, stride, padding, dilation):
    """x: (N,C,H,W) -> (N, C*kh*kw, Hout*Wout); K is C-major, (kh,kw)-minor, so it
    matches weight.reshape(Cout, Cin*kh*kw) with no extra transpose."""
    n, c, h, w = x.shape
    hout = (h + 2 * padding - dilation * (kh - 1) - 1) // stride + 1
    wout = (w + 2 * padding - dilation * (kw - 1) - 1) // stride + 1
    xp = jnp.pad(x, ((0, 0), (0, 0), (padding, padding), (padding, padding)))
    cols = []
    for i in range(kh):
        for j in range(kw):
            r0, c0 = i * dilation, j * dilation
            cols.append(xp[:, :,
                           r0:r0 + stride * (hout - 1) + 1:stride,
                           c0:c0 + stride * (wout - 1) + 1:stride])
    patches = jnp.stack(cols, axis=2)                       # (N, C, kk, Hout, Wout)
    return patches.reshape(n, c * kh * kw, hout * wout), hout, wout


# ------------------------------ Pallas kernels -------------------------------

def _conv_bn_kernel_single_k(p_ref, w_ref, ratio_ref, scale_ref, shift_ref, o_ref):
    """grid = (batch, Cout tiles, HW tiles); whole K resident -> single dot + fused
    epilogue, no scratch, no init/finalize branches."""
    acc = jnp.dot(w_ref[...], p_ref[...], preferred_element_type=jnp.float32)
    o_ref[...] = acc * ratio_ref[...] * scale_ref[...] + shift_ref[...]


def _conv_bn_kernel_multi_k(p_ref, w_ref, ratio_ref, scale_ref, shift_ref, o_ref):
    """grid = (batch, Cout tiles, HW tiles, K tiles); K innermost; accumulate
    directly into the resident f32 output block (no acc scratch)."""
    k = pl.program_id(3)

    @pl.when(k == 0)
    def _init():
        o_ref[...] = jnp.zeros_like(o_ref)

    o_ref[...] += jnp.dot(w_ref[...], p_ref[...], preferred_element_type=jnp.float32)

    @pl.when(k == pl.num_programs(3) - 1)
    def _finalize():
        # partial-conv re-weighting (bias is None) + folded eval-mode BatchNorm.
        o_ref[...] = o_ref[...] * ratio_ref[...] * scale_ref[...] + shift_ref[...]


# ------------------------------- module wrapper -------------------------------

def weighted_partial_conv2d_bn_act(x, mask, weight, bn_gamma, bn_beta, bn_mean,
                                   bn_var, *, stride=1, padding=0, dilation=1,
                                   object_size=64, bn_eps=1e-5):
    """Forward of WeightedPartialConv2d_BN_ACT (bias=False, multi_channel=False,
    trg_weight_model=True, return_mask=True, act = identity)."""
    n, cin, h, w = x.shape
    cout, cin_w, kh, kw = weight.shape
    assert cin_w == cin
    k_dim = cin * kh * kw

    sigma = min(h, w) / object_size
    wm = get_weight_model(h, w, sigma).astype(jnp.float32)       # (1,1,H,W)

    # ---- mask branch: 1-channel all-ones convs == patch sums (tiny; XLA fuses) ----
    mwm_p, hout, wout = _im2col_km((mask * wm).astype(jnp.float32),
                                   kh, kw, stride, padding, dilation)
    wm_p, _, _ = _im2col_km(wm, kh, kw, stride, padding, dilation)
    hw = hout * wout
    update_raw = mwm_p.sum(axis=1).reshape(hw)                   # f32
    slide = wm_p.sum(axis=1).reshape(hw)
    mask_ratio = slide / jnp.maximum(update_raw, 1e-8)
    update_mask = update_raw >= 1e-8
    mask_ratio = (mask_ratio * update_mask.astype(jnp.float32)).astype(jnp.float32)

    # ---- main branch: im2col (bf16) + fused matmul/ratio/BN in Pallas ----
    # TODO(synk): im2col is still materialized in HBM by XLA (bf16); fully fusing the
    # patch extraction into the kernel (manual DMA of input row bands, K split per kh
    # tap) would remove the remaining kh*kw read amplification for large images.
    xm = (x * mask).astype(jnp.bfloat16)                         # mask_in is not None
    patches, _, _ = _im2col_km(xm, kh, kw, stride, padding, dilation)  # (N, K, HW)

    # ----- tiling -----
    # HW (output positions) lives on the lane axis -> 128-multiple tiles, up to 512.
    if hw >= 512:
        tm = 512
    elif hw >= 256:
        tm = 256
    else:
        tm = 128
    hw_pad = _round_up(hw, tm)

    # Cout lives on the sublane axis -> only 8-row padding; tile only when very large
    # so per-step VMEM stays well inside v7x's 64 MiB.
    cout_pad = _round_up(cout, 8)
    if cout_pad > 1024:
        tn = 512                                 # 256/512-wide fills v6e/v7x MXU
        cout_pad = _round_up(cout, tn)
    else:
        tn = cout_pad

    # K: single resident tile for common sizes (weight DMAed once for the whole grid,
    # no accumulation pass); otherwise tile at 512 to bound zero-padding waste.
    if k_dim <= 2048:
        k_pad = _round_up(k_dim, 8)
        tk = k_pad
    else:
        tk = 512
        k_pad = _round_up(k_dim, tk)
    k_tiles = k_pad // tk

    j_tiles = cout_pad // tn
    i_tiles = hw_pad // tm
    # v7x megacore: ensure >= 2 parallel grid tiles when the shape allows it.
    if n * j_tiles * i_tiles < 2 and tm >= 256:
        tm //= 2
        i_tiles = hw_pad // tm

    p3 = jnp.pad(patches, ((0, 0), (0, k_pad - k_dim), (0, hw_pad - hw)))
    w_mat = weight.reshape(cout, k_dim).astype(jnp.bfloat16)     # (Cout, K)
    w_mat = jnp.pad(w_mat, ((0, cout_pad - cout), (0, k_pad - k_dim)))

    ratio_row = jnp.pad(mask_ratio, (0, hw_pad - hw)).reshape(1, hw_pad)

    # Pre-folded eval-mode BatchNorm: y = x*scale + shift.
    scale = bn_gamma.astype(jnp.float32) * lax.rsqrt(bn_var.astype(jnp.float32) + bn_eps)
    shift = bn_beta.astype(jnp.float32) - bn_mean.astype(jnp.float32) * scale
    scale_col = jnp.pad(scale, (0, cout_pad - cout)).reshape(cout_pad, 1)
    shift_col = jnp.pad(shift, (0, cout_pad - cout)).reshape(cout_pad, 1)

    # VMEM limit derived from actual (double-buffered) tile bytes, capped at 64 MiB
    # so it is also valid on v7x.
    tile_bytes = (2 * tk * tm * 2            # patches (bf16)
                  + 2 * tn * tk * 2          # weights (bf16)
                  + 2 * tn * tm * 4          # output  (f32, accumulates in place)
                  + 2 * tm * 4 + 4 * tn * 4) # ratio / scale / shift
    vmem_limit = int(min(64 << 20, max(32 << 20, 2 * tile_bytes)))

    if k_tiles == 1:
        grid = (n, j_tiles, i_tiles)
        in_specs = [
            pl.BlockSpec((None, tk, tm), lambda b, j, i: (b, 0, i)),   # patches (K, HW)
            pl.BlockSpec((tn, tk), lambda b, j, i: (j, 0)),            # weights (resident)
            pl.BlockSpec((1, tm), lambda b, j, i: (0, i)),             # mask ratio (row)
            pl.BlockSpec((tn, 1), lambda b, j, i: (j, 0)),             # BN scale
            pl.BlockSpec((tn, 1), lambda b, j, i: (j, 0)),             # BN shift
        ]
        out_spec = pl.BlockSpec((None, tn, tm), lambda b, j, i: (b, j, i))
        kernel = _conv_bn_kernel_single_k
        dims = ("parallel", "parallel", "parallel")
    else:
        grid = (n, j_tiles, i_tiles, k_tiles)
        in_specs = [
            pl.BlockSpec((None, tk, tm), lambda b, j, i, k: (b, k, i)),
            pl.BlockSpec((tn, tk), lambda b, j, i, k: (j, k)),
            pl.BlockSpec((1, tm), lambda b, j, i, k: (0, i)),
            pl.BlockSpec((tn, 1), lambda b, j, i, k: (j, 0)),
            pl.BlockSpec((tn, 1), lambda b, j, i, k: (j, 0)),
        ]
        out_spec = pl.BlockSpec((None, tn, tm), lambda b, j, i, k: (b, j, i))
        kernel = _conv_bn_kernel_multi_k
        dims = ("parallel", "parallel", "parallel", "arbitrary")

    out_mat = pl.pallas_call(
        kernel,
        out_shape=jax.ShapeDtypeStruct((n, cout_pad, hw_pad), jnp.float32),
        grid=grid,
        in_specs=in_specs,
        out_specs=out_spec,
        compiler_params=pltpu.CompilerParams(
            dimension_semantics=dims,
            vmem_limit_bytes=vmem_limit),
    )(p3, w_mat, ratio_row, scale_col, shift_col)

    # Output is already (N, Cout, HW): crop the sublane/lane padding and reshape.
    out = out_mat[:, :cout, :hw].reshape(n, cout, hout, wout)
    mask_out = update_mask.reshape(1, 1, hout, wout)             # bool, like torch.ge
    # act: the reference stores nn.Identity; semantically identity -> no-op.
    # TODO(synk): BatchNorm is applied in eval mode (running stats); training-mode
    # batch statistics would need an extra cross-tile reduction pass.
    return out, mask_out


# ------------------------------- pure-JAX reference -------------------------------

def _reference(x, mask, weight, gamma, beta, rmean, rvar, *, stride, padding,
               dilation, object_size, eps=1e-5, conv_dtype=jnp.bfloat16):
    """Semantic reference.  conv_dtype mirrors the kernel's deliberate bf16 MXU
    input precision (accumulation stays f32) so the comparison stays tight."""
    n, cin, h, w = x.shape
    cout, _, kh, kw = weight.shape
    wm = get_weight_model(h, w, min(h, w) / object_size).astype(jnp.float32)
    ones_k = jnp.ones((1, 1, kh, kw), jnp.float32)

    def conv(a, b):
        return lax.conv_general_dilated(
            a, b, (stride, stride), [(padding, padding), (padding, padding)],
            rhs_dilation=(dilation, dilation),
            dimension_numbers=("NCHW", "OIHW", "NCHW"),
            preferred_element_type=jnp.float32)

    update = conv(mask * wm, ones_k)
    slide = conv(wm, ones_k)
    ratio = slide / jnp.maximum(update, 1e-8)
    umask = update >= 1e-8
    ratio = ratio * umask.astype(jnp.float32)
    raw = conv((x * mask).astype(conv_dtype), weight.astype(conv_dtype))
    out = raw * ratio
    inv = lax.rsqrt(rvar + eps)
    out = (out - rmean[None, :, None, None]) * inv[None, :, None, None] \
        * gamma[None, :, None, None] + beta[None, :, None, None]
    return out, umask


# ------------------------------------ main ------------------------------------

if __name__ == "__main__":
    key = jax.random.PRNGKey(0)
    k1, k2, k3, k4, k5, k6, k7 = jax.random.split(key, 7)

    N, Cin, H, W = 2, 4, 16, 16
    Cout, KH, KW = 8, 3, 3
    stride, padding, dilation = 1, 1, 1
    object_size = 64

    x = jax.random.normal(k1, (N, Cin, H, W), jnp.float32)
    mask = (jax.random.uniform(k2, (1, 1, H, W)) > 0.3).astype(jnp.float32)

    # Conv2d default (kaiming-uniform-style) init, bias=False as in the module default.
    fan_in = Cin * KH * KW
    bound = 1.0 / np.sqrt(fan_in)
    weight = jax.random.uniform(k3, (Cout, Cin, KH, KW), jnp.float32, -bound, bound)

    # Non-trivial BatchNorm2d parameters / running stats (eval mode).
    gamma = jax.random.uniform(k4, (Cout,), jnp.float32, 0.5, 1.5)
    beta = 0.1 * jax.random.normal(k5, (Cout,), jnp.float32)
    rmean = 0.1 * jax.random.normal(k6, (Cout,), jnp.float32)
    rvar = jax.random.uniform(k7, (Cout,), jnp.float32, 0.5, 1.5)

    out, mask_out = weighted_partial_conv2d_bn_act(
        x, mask, weight, gamma, beta, rmean, rvar,
        stride=stride, padding=padding, dilation=dilation, object_size=object_size)
    jax.block_until_ready((out, mask_out))

    ref_out, ref_mask = _reference(
        x, mask, weight, gamma, beta, rmean, rvar,
        stride=stride, padding=padding, dilation=dilation, object_size=object_size)

    np.testing.assert_allclose(np.asarray(out), np.asarray(ref_out),
                               rtol=1e-2, atol=1e-2)
    np.testing.assert_array_equal(np.asarray(mask_out), np.asarray(ref_mask))
    print("KERNEL_OK")
</pallas_src>

<mosaic_0001>
module attributes {stable_mosaic.version = 11 : i64} {
  func.func @_conv_bn_kernel_single_k(%arg0: i32, %arg1: i32, %arg2: i32, %arg3: memref<1x40x256xbf16, #tpu.memory_space<vmem>>, %arg4: memref<8x40xbf16, #tpu.memory_space<vmem>>, %arg5: memref<1x256xf32, #tpu.memory_space<vmem>>, %arg6: memref<8x1xf32, #tpu.memory_space<vmem>>, %arg7: memref<8x1xf32, #tpu.memory_space<vmem>>, %arg8: memref<1x8x256xf32, #tpu.memory_space<vmem>>) attributes {dimension_semantics = [#tpu.dimension_semantics<parallel>, #tpu.dimension_semantics<parallel>, #tpu.dimension_semantics<parallel>], iteration_bounds = array<i64: 2, 1, 1>, scalar_prefetch = 0 : i64, scratch_operands = 0 : i64, tpu.core_type = #tpu.core_type<tc>, window_params = [{transform_indices = @transform_0, window_bounds = array<i64: 1, 40, 256>}, {transform_indices = @transform_1, window_bounds = array<i64: 8, 40>}, {transform_indices = @transform_2, window_bounds = array<i64: 1, 256>}, {transform_indices = @transform_3, window_bounds = array<i64: 8, 1>}, {transform_indices = @transform_4, window_bounds = array<i64: 8, 1>}, {transform_indices = @transform_5, window_bounds = array<i64: 1, 8, 256>}]} {
    %c0 = arith.constant 0 : index
    %c0_0 = arith.constant 0 : index
    %0 = vector.load %arg4[%c0, %c0_0] : memref<8x40xbf16, #tpu.memory_space<vmem>>, vector<8x40xbf16>
    %c0_1 = arith.constant 0 : index
    %c0_2 = arith.constant 0 : index
    %c0_3 = arith.constant 0 : index
    %1 = vector.load %arg3[%c0_1, %c0_2, %c0_3] : memref<1x40x256xbf16, #tpu.memory_space<vmem>>, vector<1x40x256xbf16>
    %2 = vector.shape_cast %1 : vector<1x40x256xbf16> to vector<40x256xbf16>
    %cst = arith.constant dense<0.000000e+00> : vector<8x256xf32>
    %3 = tpu.matmul %0, %2, %cst {dimension_numbers = #tpu.dot_dimension_numbers<[1], [0], [0], [1], [0, 0, 1, 1], [], []>} : vector<8x40xbf16>, vector<40x256xbf16>, vector<8x256xf32> -> vector<8x256xf32>
    %c0_4 = arith.constant 0 : index
    %c0_5 = arith.constant 0 : index
    %4 = vector.load %arg5[%c0_4, %c0_5] : memref<1x256xf32, #tpu.memory_space<vmem>>, vector<1x256xf32>
    %5 = vector.broadcast %4 : vector<1x256xf32> to vector<8x256xf32>
    %6 = arith.mulf %3, %5 : vector<8x256xf32>
    %c0_6 = arith.constant 0 : index
    %c0_7 = arith.constant 0 : index
    %7 = vector.load %arg6[%c0_6, %c0_7] : memref<8x1xf32, #tpu.memory_space<vmem>>, vector<8x1xf32>
    %8 = vector.broadcast %7 : vector<8x1xf32> to vector<8x256xf32>
    %9 = arith.mulf %6, %8 : vector<8x256xf32>
    %c0_8 = arith.constant 0 : index
    %c0_9 = arith.constant 0 : index
    %10 = vector.load %arg7[%c0_8, %c0_9] : memref<8x1xf32, #tpu.memory_space<vmem>>, vector<8x1xf32>
    %11 = vector.broadcast %10 : vector<8x1xf32> to vector<8x256xf32>
    %12 = arith.addf %9, %11 : vector<8x256xf32>
    %c0_10 = arith.constant 0 : index
    %c0_11 = arith.constant 0 : index
    %c0_12 = arith.constant 0 : index
    %13 = vector.load %arg8[%c0_10, %c0_11, %c0_12] : memref<1x8x256xf32, #tpu.memory_space<vmem>>, vector<1x8x256xf32>
    %14 = vector.shape_cast %13 : vector<1x8x256xf32> to vector<8x256xf32>
    %15 = vector.shape_cast %12 : vector<8x256xf32> to vector<1x8x256xf32>
    tpu.vector_store %arg8[%c0_10, %c0_11, %c0_12], %15 {strides = array<i32>} : memref<1x8x256xf32, #tpu.memory_space<vmem>>, vector<1x8x256xf32>,
    return
  }
  func.func @transform_0(%arg0: i32, %arg1: i32, %arg2: i32) -> (i32, i32, i32) {
    %c0_i32 = arith.constant 0 : i32
    %c0_i32_0 = arith.constant 0 : i32
    return %arg0, %c0_i32, %arg2 : i32, i32, i32
  }
  func.func @transform_1(%arg0: i32, %arg1: i32, %arg2: i32) -> (i32, i32) {
    %c0_i32 = arith.constant 0 : i32
    %c0_i32_0 = arith.constant 0 : i32
    return %arg1, %c0_i32 : i32, i32
  }
  func.func @transform_2(%arg0: i32, %arg1: i32, %arg2: i32) -> (i32, i32) {
    %c0_i32 = arith.constant 0 : i32
    %c0_i32_0 = arith.constant 0 : i32
    return %c0_i32, %arg2 : i32, i32
  }
  func.func @transform_3(%arg0: i32, %arg1: i32, %arg2: i32) -> (i32, i32) {
    %c0_i32 = arith.constant 0 : i32
    %c0_i32_0 = arith.constant 0 : i32
    return %arg1, %c0_i32 : i32, i32
  }
  func.func @transform_4(%arg0: i32, %arg1: i32, %arg2: i32) -> (i32, i32) {
    %c0_i32 = arith.constant 0 : i32
    %c0_i32_0 = arith.constant 0 : i32
    return %arg1, %c0_i32 : i32, i32
  }
  func.func @transform_5(%arg0: i32, %arg1: i32, %arg2: i32) -> (i32, i32, i32) {
    %c0_i32 = arith.constant 0 : i32
    return %arg0, %arg1, %arg2 : i32, i32, i32
  }
}

</mosaic_0001>

<llo_original>
// kernel: tpu_custom_call.1
$region0: #{tpu_custom_call.1}
  #allocation0 [shape = 'u32[]', space=smem, size = 0x4, offset = 0x4, fixed_abs, tag = 'smem constant byte address 0x4 - core index']
  #allocation1 [shape = 'u32[144,128]{1,0:T(1,128)}', space=vmem, size = 0x12000, scoped, tag = 'internal scratch']
  %s0 = inlined_call_operand.hbm [shape: bf16[2,40,256], index: 0, kind: input, shape index: {}]
  %s1 = inlined_call_operand.vmem [shape: bf16[8,40], index: 1, kind: input, shape index: {}]
  %s2 = inlined_call_operand.vmem [shape: f32[1,256], index: 2, kind: input, shape index: {}]
  %s3 = inlined_call_operand.vmem [shape: f32[8,1], index: 3, kind: input, shape index: {}]
  %s4 = inlined_call_operand.vmem [shape: f32[8,1], index: 4, kind: input, shape index: {}]
  %s5 = inlined_call_operand.hbm [shape: f32[2,8,256], index: 5, kind: output, shape index: {}]
  %s6 = sld [smem:[#allocation0]]
  $region57: #{tpu_custom_call.1} parent=0
    _
  %s8 = ssub.s32 1, %s6
  %s9 = scalar_select 0, %s8, %s6
  $region1: #{tpu_custom_call.1} parent=0
    #allocation2 [shape = 'u8[40960]{0}', space=vmem, size = 0xa000, scoped, tag = 'input window, operand 0']
    #allocation3 [shape = 's32[2]{0}', space=sflag, size = 0x8, scoped, tag = 'scoped memory for tpu_custom_call.1']
    #allocation4 [shape = 's32[2]{0}', space=sflag, size = 0x8, scoped, tag = 'scoped memory for tpu_custom_call.1']
    #allocation5 [shape = 'u8[16384]{0}', space=vmem, size = 0x4000, scoped, tag = 'output window, operand 0']
    %10 = vsyncpa [#allocation3], 0
    %s11 = scalar_lea.sflag [#allocation3], 1
    %12 = vsyncpa %s11, 0
    %13 = vsyncpa [#allocation4], 0
    %s14 = scalar_lea.sflag [#allocation4], 1
    %15 = vsyncpa %s14, 0
    loop: start=0, step=1, limit=4
    $region2: #{tpu_custom_call.1} parent=1 // loop_pre_header
      _
    $region3: #{tpu_custom_call.1} parent=1 // loop_header
      %s17 = sphi 0, %s21
      %p18 = scmp.ge.s32.totalorder %s17, 4
      %s24 = sphi 0, %s43
      %s25 = sphi 0, %s39
      %s26 = sphi 0, %s35
      %s27 = sphi 0, %s24
      %s28 = sphi 0, %s25
      %s29 = sphi 0, %s26
      %s30 = sphi 0, %s27
      %s31 = sphi 0, %s28
      %s32 = sphi 0, %s29
      %s48 = sphi 0, %s50
      %s51 = sphi 0, %s48
      %s52 = sphi 0, %s51
      %s68 = sphi 0, %s52
      %s74 = sphi 0, %s76
      %s77 = sphi 0, %s74
      %s78 = sphi 0, %s77
      %s94 = sphi 0, %s78
      %s100 = sphi 0, %s102
      %s103 = sphi 0, %s100
      %s104 = sphi 0, %s103
      %s120 = sphi 0, %s104
      %s126 = sphi 0, %s128
      %s129 = sphi 0, %s126
      %s130 = sphi 0, %s129
      %s146 = sphi 0, %s130
      %s152 = sphi 0, %s154
      %s155 = sphi 0, %s152
      %s156 = sphi 0, %s155
      %s172 = sphi 0, %s156
      %s182 = sphi 0, %s184
      %s185 = sphi 0, %s182
      %s186 = sphi 0, %s185
      %s202 = sphi 0, %s186
    $region4: #{tpu_custom_call.1} parent=1 // loop_header_branch
      %20 = sbr.rel (%p18) target = $region8
    $region5: #{tpu_custom_call.1} parent=1 // loop_body
      %s22 = ssub.s32 %s17, 1
      %s23 = ssub.s32 %s17, 2
      %s33 = sadd.s32 1, %s26
      %p34 = scmp.ge.s32.totalorder %s33, 1
      %s35 = scalar_select %p34, 0, %s33
      %s36 = sadd.s32 1, %s25
      %s37 = scalar_select %p34, %s36, %s25
      %p38 = scmp.ge.s32.totalorder %s37, 1
      %s39 = scalar_select %p38, 0, %s37
      %s40 = sadd.s32 1, %s24
      %s41 = scalar_select %p38, %s40, %s24
      %p42 = scmp.ge.s32.totalorder %s41, 2
      %s43 = scalar_select %p42, 0, %s41
      %s44 = ssub.s32 %s24, %s43
      %s45 = ssub.s32 %s26, %s35
      %s46 = sor.u32 %s44, %s45
      %p47 = scmp.eq.s32.totalorder %s46, 0
      %s49 = sadd.s32 %s48, 1
      %s50 = scalar_select %p47, %s48, %s49
      %p53 = pneg %p47
      %p54 = scmp.eq.s32.totalorder %s17, 1
      %p55 = por %p53, %p54
      %p56 = scmp.ne.s32.totalorder %s48, %s51
      %p57 = scmp.eq.s32.totalorder %s17, 0
      %p58 = por %p56, %p57
      %p59 = scmp.ne.s32.totalorder %s48, %s51
      %p60 = scmp.eq.s32.totalorder %s22, 1
      %p61 = por %p59, %p60
      %p62 = scmp.ne.s32.totalorder %s51, %s52
      %p63 = scmp.eq.s32.totalorder %s22, 0
      %p64 = por %p62, %p63
      %p65 = scmp.ne.s32.totalorder %s51, %s52
      %p66 = scmp.eq.s32.totalorder %s23, 1
      %p67 = por %p65, %p66
      %p69 = scmp.ne.s32.totalorder %s52, %s68
      %p70 = scmp.eq.s32.totalorder %s23, 0
      %p71 = por %p69, %p70
      %s72 = ssub.s32 %s25, %s39
      %p73 = scmp.eq.s32.totalorder %s72, 0
      %s75 = sadd.s32 %s74, 1
      %s76 = scalar_select %p73, %s74, %s75
      %p79 = pneg %p73
      %p80 = scmp.eq.s32.totalorder %s17, 1
      %p81 = por %p79, %p80
      %p82 = scmp.ne.s32.totalorder %s74, %s77
      %p83 = scmp.eq.s32.totalorder %s17, 0
      %p84 = por %p82, %p83
      %p85 = scmp.ne.s32.totalorder %s74, %s77
      %p86 = scmp.eq.s32.totalorder %s22, 1
      %p87 = por %p85, %p86
      %p88 = scmp.ne.s32.totalorder %s77, %s78
      %p89 = scmp.eq.s32.totalorder %s22, 0
      %p90 = por %p88, %p89
      %p91 = scmp.ne.s32.totalorder %s77, %s78
      %p92 = scmp.eq.s32.totalorder %s23, 1
      %p93 = por %p91, %p92
      %p95 = scmp.ne.s32.totalorder %s78, %s94
      %p96 = scmp.eq.s32.totalorder %s23, 0
      %p97 = por %p95, %p96
      %s98 = ssub.s32 %s26, %s35
      %p99 = scmp.eq.s32.totalorder %s98, 0
      %s101 = sadd.s32 %s100, 1
      %s102 = scalar_select %p99, %s100, %s101
      %p105 = pneg %p99
      %p106 = scmp.eq.s32.totalorder %s17, 1
      %p107 = por %p105, %p106
      %p108 = scmp.ne.s32.totalorder %s100, %s103
      %p109 = scmp.eq.s32.totalorder %s17, 0
      %p110 = por %p108, %p109
      %p111 = scmp.ne.s32.totalorder %s100, %s103
      %p112 = scmp.eq.s32.totalorder %s22, 1
      %p113 = por %p111, %p112
      %p114 = scmp.ne.s32.totalorder %s103, %s104
      %p115 = scmp.eq.s32.totalorder %s22, 0
      %p116 = por %p114, %p115
      %p117 = scmp.ne.s32.totalorder %s103, %s104
      %p118 = scmp.eq.s32.totalorder %s23, 1
      %p119 = por %p117, %p118
      %p121 = scmp.ne.s32.totalorder %s104, %s120
      %p122 = scmp.eq.s32.totalorder %s23, 0
      %p123 = por %p121, %p122
      %s124 = ssub.s32 %s25, %s39
      %p125 = scmp.eq.s32.totalorder %s124, 0
      %s127 = sadd.s32 %s126, 1
      %s128 = scalar_select %p125, %s126, %s127
      %p131 = pneg %p125
      %p132 = scmp.eq.s32.totalorder %s17, 1
      %p133 = por %p131, %p132
      %p134 = scmp.ne.s32.totalorder %s126, %s129
      %p135 = scmp.eq.s32.totalorder %s17, 0
      %p136 = por %p134, %p135
      %p137 = scmp.ne.s32.totalorder %s126, %s129
      %p138 = scmp.eq.s32.totalorder %s22, 1
      %p139 = por %p137, %p138
      %p140 = scmp.ne.s32.totalorder %s129, %s130
      %p141 = scmp.eq.s32.totalorder %s22, 0
      %p142 = por %p140, %p141
      %p143 = scmp.ne.s32.totalorder %s129, %s130
      %p144 = scmp.eq.s32.totalorder %s23, 1
      %p145 = por %p143, %p144
      %p147 = scmp.ne.s32.totalorder %s130, %s146
      %p148 = scmp.eq.s32.totalorder %s23, 0
      %p149 = por %p147, %p148
      %s150 = ssub.s32 %s25, %s39
      %p151 = scmp.eq.s32.totalorder %s150, 0
      %s153 = sadd.s32 %s152, 1
      %s154 = scalar_select %p151, %s152, %s153
      %p157 = pneg %p151
      %p158 = scmp.eq.s32.totalorder %s17, 1
      %p159 = por %p157, %p158
      %p160 = scmp.ne.s32.totalorder %s152, %s155
      %p161 = scmp.eq.s32.totalorder %s17, 0
      %p162 = por %p160, %p161
      %p163 = scmp.ne.s32.totalorder %s152, %s155
      %p164 = scmp.eq.s32.totalorder %s22, 1
      %p165 = por %p163, %p164
      %p166 = scmp.ne.s32.totalorder %s155, %s156
      %p167 = scmp.eq.s32.totalorder %s22, 0
      %p168 = por %p166, %p167
      %p169 = scmp.ne.s32.totalorder %s155, %s156
      %p170 = scmp.eq.s32.totalorder %s23, 1
      %p171 = por %p169, %p170
      %p173 = scmp.ne.s32.totalorder %s156, %s172
      %p174 = scmp.eq.s32.totalorder %s23, 0
      %p175 = por %p173, %p174
      %s176 = ssub.s32 %s24, %s43
      %s177 = ssub.s32 %s25, %s39
      %s178 = sor.u32 %s176, %s177
      %s179 = ssub.s32 %s26, %s35
      %s180 = sor.u32 %s178, %s179
      %p181 = scmp.eq.s32.totalorder %s180, 0
      %s183 = sadd.s32 %s182, 1
      %s184 = scalar_select %p181, %s182, %s183
      %p187 = pneg %p181
      %p188 = scmp.eq.s32.totalorder %s17, 1
      %p189 = por %p187, %p188
      %p190 = scmp.ne.s32.totalorder %s182, %s185
      %p191 = scmp.eq.s32.totalorder %s17, 0
      %p192 = por %p190, %p191
      %p193 = scmp.ne.s32.totalorder %s182, %s185
      %p194 = scmp.eq.s32.totalorder %s22, 1
      %p195 = por %p193, %p194
      %p196 = scmp.ne.s32.totalorder %s185, %s186
      %p197 = scmp.eq.s32.totalorder %s22, 0
      %p198 = por %p196, %p197
      %p199 = scmp.ne.s32.totalorder %s185, %s186
      %p200 = scmp.eq.s32.totalorder %s23, 1
      %p201 = por %p199, %p200
      %p203 = scmp.ne.s32.totalorder %s186, %s202
      %p204 = scmp.eq.s32.totalorder %s23, 0
      %p205 = por %p203, %p204
      %p206 = scmp.le.s32.totalorder 1, %s17
      %p207 = scmp.lt.s32.totalorder %s17, 3
      %p208 = pnand %p206, %p207
      %p209 = pneg %p208
      // Predicated region
      $region9: #{tpu_custom_call.1} parent=5 // pred_check
        _
      $region10: #{tpu_custom_call.1} parent=5 // pred_check_branch
        %211 = sbr.rel (%p208) target = $region12
      $region11: #{tpu_custom_call.1} parent=5 // pred_region
        %s212 = ssub.s32 %s17, 1
        // Predicated region
        $region13: #{tpu_custom_call.1} parent=11 // pred_check
          %p213 = pneg %p90
        $region14: #{tpu_custom_call.1} parent=11 // pred_check_branch
          %215 = sbr.rel (%p213) target = $region16
        $region15: #{tpu_custom_call.1} parent=11 // pred_region
          %p216 = scmp.lt.s32.totalorder %s28, 0
          %s217 = scalar_select %p216, %s28, 0
          %s218 = smul.addr %s217, 4
          %s219 = scalar_lea.vmem %s1, %s218
        $region16: #{tpu_custom_call.1} parent=11 // pred_fallthru
          _
        // Predicated region
        $region17: #{tpu_custom_call.1} parent=11 // pred_check
          %p220 = pneg %p116
        $region18: #{tpu_custom_call.1} parent=11 // pred_check_branch
          %222 = sbr.rel (%p220) target = $region20
        $region19: #{tpu_custom_call.1} parent=11 // pred_region
          %s223 = smul.u32 2, %s29
          %p224 = scmp.lt.s32.totalorder %s223, 1
          %s225 = scalar_select %p224, %s223, 1
          %s226 = scalar_lea.vmem %s2, %s225
          %s227 = smul.u32 2, %s29
        $region20: #{tpu_custom_call.1} parent=11 // pred_fallthru
          _
        // Predicated region
        $region21: #{tpu_custom_call.1} parent=11 // pred_check
          %p228 = pneg %p142
        $region22: #{tpu_custom_call.1} parent=11 // pred_check_branch
          %230 = sbr.rel (%p228) target = $region24
        $region23: #{tpu_custom_call.1} parent=11 // pred_region
          %p231 = scmp.lt.s32.totalorder %s28, 0
          %s232 = scalar_select %p231, %s28, 0
          %s233 = smul.addr %s232, 8
          %s234 = scalar_lea.vmem %s3, %s233
        $region24: #{tpu_custom_call.1} parent=11 // pred_fallthru
          _
        // Predicated region
        $region25: #{tpu_custom_call.1} parent=11 // pred_check
          %p235 = pneg %p168
        $region26: #{tpu_custom_call.1} parent=11 // pred_check_branch
          %237 = sbr.rel (%p235) target = $region28
        $region27: #{tpu_custom_call.1} parent=11 // pred_region
          %p238 = scmp.lt.s32.totalorder %s28, 0
          %s239 = scalar_select %p238, %s28, 0
          %s240 = smul.addr %s239, 8
          %s241 = scalar_lea.vmem %s4, %s240
        $region28: #{tpu_custom_call.1} parent=11 // pred_fallthru
          _
      $region12: #{tpu_custom_call.1} parent=5 // pred_fallthru
        _
      %p242 = scmp.lt.s32.totalorder %s17, 2
      // Predicated region
      $region29: #{tpu_custom_call.1} parent=5 // pred_check
        %p243 = pneg %p242
      $region30: #{tpu_custom_call.1} parent=5 // pred_check_branch
        %245 = sbr.rel (%p243) target = $region32
      $region31: #{tpu_custom_call.1} parent=5 // pred_region
        // Predicated region
        $region33: #{tpu_custom_call.1} parent=31 // pred_check
          %p246 = pneg %p58
        $region34: #{tpu_custom_call.1} parent=31 // pred_check_branch
          %248 = sbr.rel (%p246) target = $region36
        $region35: #{tpu_custom_call.1} parent=31 // pred_region
          %s249 = sand.u32 %s48, 1
          %s250 = scalar_lea.sflag [#allocation3], %s249
          %s251 = sand.u32 %s48, 1
          %s252 = smul.addr %s251, 40
          %s253 = scalar_lea.vmem [#allocation2], %s252
          %s254 = smul.u32 2, %s26
          %s256 = ssub.s32 640, 640
          %257 = vsyncadd %s250, %s256
          %s258 = smul.addr %s24, 10
          %s259 = sadd.s32 %s254, %s258
          %s260 = smul.addr %s259, 64
          %s261 = scalar_lea.hbm %s0, %s260
          %s262 = sshll.u32 %s253, 4
          %s263 = int_to_ptr.vmem [resolvable:$true] %s262
          %268 = dma.hbm_to_vmem [thread:$0]  %s261, 640, %s263, %s250, 128, 128, 8
        $region36: #{tpu_custom_call.1} parent=31 // pred_fallthru
          _
      $region32: #{tpu_custom_call.1} parent=5 // pred_fallthru
        _
      %p269 = scmp.le.s32.totalorder 1, %s17
      %p270 = scmp.lt.s32.totalorder %s17, 3
      %p271 = pnand %p269, %p270
      %p272 = pneg %p271
      // Predicated region
      $region37: #{tpu_custom_call.1} parent=5 // pred_check
        _
      $region38: #{tpu_custom_call.1} parent=5 // pred_check_branch
        %274 = sbr.rel (%p271) target = $region40
      $region39: #{tpu_custom_call.1} parent=5 // pred_region
        %s275 = ssub.s32 %s17, 1
        %s276 = sand.u32 %s51, 1
        %s277 = scalar_lea.sflag [#allocation3], %s276
        %s278 = sand.u32 %s51, 1
        %s279 = smul.addr %s278, 40
        %s280 = scalar_lea.vmem [#allocation2], %s279
        // Predicated region
        $region41: #{tpu_custom_call.1} parent=39 // pred_check
          %p281 = pneg %p64
        $region42: #{tpu_custom_call.1} parent=39 // pred_check_branch
          %283 = sbr.rel (%p281) target = $region44
        $region43: #{tpu_custom_call.1} parent=39 // pred_region
          %284 = dma.done %s277, 640
        $region44: #{tpu_custom_call.1} parent=39 // pred_fallthru
          _
        %s285 = sand.u32 %s51, 1
        %s286 = scalar_lea.sflag [#allocation3], %s285
        %s287 = sand.u32 %s51, 1
        %s288 = smul.addr %s287, 40
        %s289 = scalar_lea.vmem [#allocation2], %s288
        %p290 = pneg %p64
        %p291 = pneg %p61
        %p292 = scmp.lt.s32.totalorder %s28, 0
        %s293 = scalar_select %p292, %s28, 0
        %s294 = smul.addr %s293, 4
        %s295 = scalar_lea.vmem %s1, %s294
        %p296 = pneg %p90
        %p297 = pneg %p87
        %s298 = smul.u32 2, %s29
        %p299 = scmp.lt.s32.totalorder %s298, 1
        %s300 = scalar_select %p299, %s298, 1
        %s301 = scalar_lea.vmem %s2, %s300
        %p302 = pneg %p116
        %p303 = pneg %p113
        %p304 = scmp.lt.s32.totalorder %s28, 0
        %s305 = scalar_select %p304, %s28, 0
        %s306 = smul.addr %s305, 8
        %s307 = scalar_lea.vmem %s3, %s306
        %p308 = pneg %p142
        %p309 = pneg %p139
        %p310 = scmp.lt.s32.totalorder %s28, 0
        %s311 = scalar_select %p310, %s28, 0
        %s312 = smul.addr %s311, 8
        %s313 = scalar_lea.vmem %s4, %s312
        %p314 = pneg %p168
        %p315 = pneg %p165
        %p316 = pneg %p198
        %p317 = pneg %p195
        %s318 = sand.u32 %s185, 1
        %s319 = scalar_lea.sflag [#allocation4], %s318
        %s320 = sand.u32 %s185, 1
        %s321 = smul.addr %s320, 16
        %s322 = scalar_lea.vmem [#allocation5], %s321
        %s323 = smul.u32 2, %s29
        %p324 = scmp.lt.s32.totalorder %s28, 0
        %s325 = scalar_select %p324, %s28, 0
        %s326 = smul.addr %s325, 4
        %s327 = scalar_lea.vmem %s1, %s326
        %s328 = smul.u32 2, %s29
        %p329 = scmp.lt.s32.totalorder %s328, 1
        %s330 = scalar_select %p329, %s328, 1
        %s331 = scalar_lea.vmem %s2, %s330
        %s332 = smul.u32 2, %s29
        %p333 = scmp.lt.s32.totalorder %s28, 0
        %s334 = scalar_select %p333, %s28, 0
        %s335 = smul.addr %s334, 8
        %s336 = scalar_lea.vmem %s3, %s335
        %p337 = scmp.lt.s32.totalorder %s28, 0
        %s338 = scalar_select %p337, %s28, 0
        %s339 = smul.addr %s338, 8
        %s340 = scalar_lea.vmem %s4, %s339
        %s341 = smul.u32 2, %s29
        %v343 = vld [vmem:[%s327] sm:$0xf]
        %v344 = vld [vmem:[%s280] sm:$0xff]
        %v345 = vld [vmem:[%s280 + $0x8] sm:$0xff]
        %v346 = vld [vmem:[%s280 + $0x10] sm:$0xff]
        %v347 = vld [vmem:[%s280 + $0x18] sm:$0xff]
        %v348 = vld [vmem:[%s280 + $0x20] sm:$0xff]
        %v354 = vunpack.c.l.b16 %v344
        %v355 = vunpack.c.h.b16 %v344
        %v356 = vunpack.c.l.b16 %v345
        %v357 = vunpack.c.h.b16 %v345
        %v358 = vunpack.c.l.b16 %v346
        %v359 = vunpack.c.h.b16 %v346
        %v360 = vunpack.c.l.b16 %v347
        %v361 = vunpack.c.h.b16 %v347
        %v362 = vunpack.c.l.b16 %v348
        %v363 = vunpack.c.h.b16 %v348
        %v364 = vpack.c.b16 %v356, %v354
        %v365 = vpack.c.b16 %v357, %v355
        %v366 = vpack.c.b16 %v360, %v358
        %v367 = vpack.c.b16 %v361, %v359
        %v368 = vpack.c.b16 %v362, %v362
        %v369 = vpack.c.b16 %v363, %v363
        %vm374 = vcmask 326656
        %v376 = vsel %vm374, %v343, 0
        %vm378 = vcmask 1043456
        %v380 = vsel %vm378, %v368, 0
        %v383 = vsel %vm378, %v369, 0
        %385 = vmatprep.subr.bf16.mxu0 0
        %386 = vmatpush1.bf16.msra.mxu0 0
        %387 = vmatprep.subr.bf16.mxu0 0
        %388 = vmatpush1.bf16.msra.mxu0 0
        %389 = vmatprep.subr.bf16.mxu0 0
        %390 = vmatpush1.bf16.msra.mxu0 0
        %391 = vmatprep.subr.bf16.mxu0 0
        %392 = vmatpush1.bf16.msra.mxu0 0
        %393 = vmatprep.subr.bf16.mxu0 0
        %394 = vmatpush1.bf16.msra.mxu0 0
        %395 = vmatprep.subr.bf16.mxu0 %v383
        %396 = vmatpush1.bf16.msra.mxu0 %v380
        %397 = vmatprep.subr.bf16.mxu0 %v367
        %398 = vmatpush1.bf16.msra.mxu0 %v366
        %399 = vmatprep.subr.bf16.mxu0 %v365
        %400 = vmatpush1.bf16.msra.mxu0 %v364
        %401 = vmatprep.subr.bf16.mxu0 0
        %402 = vmatpush2.bf16.msra.mxu0 0
        %403 = vmatprep.subr.bf16.mxu0 0
        %404 = vmatpush2.bf16.msra.mxu0 0
        %405 = vmatprep.subr.bf16.mxu0 0
        %406 = vmatpush2.bf16.msra.mxu0 0
        %407 = vmatprep.subr.bf16.mxu0 0
        %408 = vmatpush2.bf16.msra.mxu0 0
        %409 = vmatprep.subr.bf16.mxu0 0
        %410 = vmatpush2.bf16.msra.mxu0 0
        %411 = vmatprep.subr.bf16.mxu0 0
        %412 = vmatpush2.bf16.msra.mxu0 0
        %413 = vmatprep.subr.bf16.mxu0 0
        %414 = vmatpush2.bf16.msra.mxu0 0
        %415 = vmatprep.subr.bf16.mxu0 0
        %416 = vmatpush2.bf16.msra.mxu0 0
        %417 = vmatprep.mubr.bf16.mxu0 0
        %418 = vmatmul.mubr.bf16.gmra.mxu0 %v376
        %v419 = vpop.f32.mrf.mxu0
        %v420 = vadd.f32 0.0, %v419
        %v421 = vpop.f32.mrf.mxu0
        %v422 = vadd.f32 0.0, %v421
        %v423 = vpop.f32.mrf.mxu0
        %v424 = vpop.f32.mrf.mxu0
        %425 = vdwg.mxu0
        %v426 = vld [vmem:[%s331] sm:$0x3]
        %v428 = vlaneseq
        %v429 = vshrl.u32 %v428, 7
        %v430 = vsub.s32 0, %v429
        %v431 = vrot.slane %v426, %v430
        %v432 = vlaneseq
        %v433 = vshrl.u32 %v432, 7
        %v434 = vsub.s32 1, %v433
        %v435 = vrot.slane %v426, %v434
        %v438 = vmul.f32 %v420, %v431
        %v439 = vmul.f32 %v422, %v435
        %v440 = vld [vmem:[%s336] sm:$0xff]
        %442 = vset.pattern.permute.xlu0 0
        %443 = vperm.xlu0 %442, %v440
        %v444 = vpop.permute.xlu0 %443
        %v446 = vmul.f32 %v438, %v444
        %v447 = vmul.f32 %v439, %v444
        %v448 = vld [vmem:[%s340] sm:$0xff]
        %450 = vset.pattern.permute.xlu0 0
        %451 = vperm.xlu0 %450, %v448
        %v452 = vpop.permute.xlu0 %451
        %v454 = vadd.f32 %v446, %v452
        %v455 = vadd.f32 %v447, %v452
        %456 = vst [vmem:[%s322] sm:$0xff] %v454
        %457 = vst [vmem:[%s322 + $0x8] sm:$0xff] %v455
        %s458 = sand.u32 %s185, 1
        %s459 = scalar_lea.sflag [#allocation4], %s458
        %s460 = sand.u32 %s185, 1
        %s461 = smul.addr %s460, 16
        %s462 = scalar_lea.vmem [#allocation5], %s461
        // Predicated region
        $region45: #{tpu_custom_call.1} parent=39 // pred_check
          %p463 = pneg %p195
        $region46: #{tpu_custom_call.1} parent=39 // pred_check_branch
          %465 = sbr.rel (%p463) target = $region48
        $region47: #{tpu_custom_call.1} parent=39 // pred_region
          %s466 = smul.u32 2, %s29
          %s468 = ssub.s32 256, 256
          %469 = vsyncadd %s459, %s468
          %s470 = smul.addr %s28, 2
          %s471 = sadd.s32 %s466, %s470
          %s472 = smul.addr %s27, 2
          %s473 = sadd.s32 %s471, %s472
          %s474 = smul.addr %s473, 128
          %s475 = scalar_lea.hbm %s5, %s474
          %s477 = sshll.u32 %s462, 4
          %s478 = int_to_ptr.vmem [resolvable:$true] %s477
          %480 = dma.vmem_to_hbm [thread:$0]  %s478, 256, %s475, %s459
        $region48: #{tpu_custom_call.1} parent=39 // pred_fallthru
          _
      $region40: #{tpu_custom_call.1} parent=5 // pred_fallthru
        _
      %p481 = scmp.le.s32.totalorder 2, %s17
      // Predicated region
      $region49: #{tpu_custom_call.1} parent=5 // pred_check
        %p482 = pneg %p481
      $region50: #{tpu_custom_call.1} parent=5 // pred_check_branch
        %484 = sbr.rel (%p482) target = $region52
      $region51: #{tpu_custom_call.1} parent=5 // pred_region
        %s485 = ssub.s32 %s17, 2
        // Predicated region
        $region53: #{tpu_custom_call.1} parent=51 // pred_check
          %p486 = pneg %p201
        $region54: #{tpu_custom_call.1} parent=51 // pred_check_branch
          %488 = sbr.rel (%p486) target = $region56
        $region55: #{tpu_custom_call.1} parent=51 // pred_region
          %s489 = sand.u32 %s186, 1
          %s490 = scalar_lea.sflag [#allocation4], %s489
          %s491 = sand.u32 %s186, 1
          %s492 = smul.addr %s491, 16
          %s493 = scalar_lea.vmem [#allocation5], %s492
          %494 = dma.done %s490, 256
        $region56: #{tpu_custom_call.1} parent=51 // pred_fallthru
          _
      $region52: #{tpu_custom_call.1} parent=5 // pred_fallthru
        _
    $region6: #{tpu_custom_call.1} parent=1 // loop_footer
      %s21 = sadd.s32 1, %s17
    $region7: #{tpu_custom_call.1} parent=1 // loop_footer_branch
      %16 = sbr.rel target = $region3
    $region8: #{tpu_custom_call.1} parent=1 // loop_exit
      _
    %495 = vsyncpa [#allocation3], 1
    %s496 = scalar_lea.sflag [#allocation3], 1
    %497 = vsyncpa %s496, 1
    %498 = vsyncpa [#allocation4], 1
    %s499 = scalar_lea.sflag [#allocation4], 1
    %500 = vsyncpa %s499, 1

</llo_original>
